<compile_context>
chip_gen: v5e
topology: v5e:2x2
jax: 0.10.0
libtpu: 0.0.40
codegen_flags: <defaults>
</compile_context>

<pallas_src>
import functools

import jax
import jax.numpy as jnp
from jax.experimental import pallas as pl
from jax.experimental.pallas import tpu as pltpu


def _pair_mlp_kernel(x_ref, si_ref, sj_ref, w1a_ref, w1b_ref, b1_ref,
                     w2_ref, b2_ref, o_ref):
    # x_ref  : (bt, N, d)  person features in the compute dtype (bf16 or f32)
    # si/sj  : (P, N)      f32 one-hot pair-selection matrices (constant)
    # w1a/w1b: (d, d)      first-layer weight halves (compute dtype)
    # b1, b2 : (1, d)      f32 biases
    # w2     : (d, d)      second-layer weight (compute dtype)
    # o_ref  : (bt, P, d)  output block
    bt = x_ref.shape[0]
    cdt = x_ref.dtype

    si = si_ref[...]
    sj = sj_ref[...]
    w1a = w1a_ref[...]
    w1b = w1b_ref[...]
    w2 = w2_ref[...]
    b1 = b1_ref[...]
    b2 = b2_ref[...]

    # Static unroll over the batch elements of this block (bt is small; the
    # heavy lifting per element is four small MXU matmuls).
    for b in range(bt):
        xb = x_ref[b]                                                  # (N, d)
        # Per-person first layer (split w1): (N-1)x fewer FLOPs than per-pair.
        a = jnp.dot(xb, w1a, preferred_element_type=jnp.float32)       # (N, d) f32
        c = jnp.dot(xb, w1b, preferred_element_type=jnp.float32)       # (N, d) f32
        # Gather-free pair build: row p of si/sj is one-hot over persons, so
        # si @ a + sj @ c == a[idx_i] + c[idx_j] exactly (0/1 weights, f32).
        hp = jnp.dot(si, a, preferred_element_type=jnp.float32)
        hp = hp + jnp.dot(sj, c, preferred_element_type=jnp.float32)   # (P, d)
        h = jnp.maximum(hp + b1, 0.0)                                  # ReLU, f32
        o = jnp.dot(h.astype(cdt), w2, preferred_element_type=jnp.float32) + b2
        o_ref[b] = o.astype(o_ref.dtype)


def _choose_bt(B, P, target_rows=512):
    """Batch elements per grid step.

    Large enough that each step moves a decent slab (amortizes per-step
    pipeline overhead), but keeps the grid length >= 2 when possible so the
    batch axis can be split across v7x's two TensorCores; bt must divide B.
    """
    bt = max(1, min(B, max(1, target_rows // max(P, 1))))
    if B >= 2:
        bt = max(1, min(bt, B // 2))
    while B % bt:
        bt -= 1
    return bt


def _interaction_forward(xc, si, sj, w1a, w1b, b1, w2, b2, *, bt, out_dtype):
    B, N, d = xc.shape
    P = si.shape[0]
    grid = (B // bt,)
    # VMEM footprint per step: double-buffered (bt,N,d) in + (bt,P,d) out plus
    # weights — a few hundred KiB at most for realistic N/d, far under the
    # 32 MiB scoped default on every generation, so no vmem_limit override.
    return pl.pallas_call(
        _pair_mlp_kernel,
        out_shape=jax.ShapeDtypeStruct((B, P, d), out_dtype),
        grid_spec=pltpu.PrefetchScalarGridSpec(
            num_scalar_prefetch=0,
            grid=grid,
            in_specs=[
                pl.BlockSpec((bt, N, d), lambda i: (i, 0, 0)),  # x (batch block)
                pl.BlockSpec((P, N), lambda i: (0, 0)),         # Si (constant)
                pl.BlockSpec((P, N), lambda i: (0, 0)),         # Sj (constant)
                pl.BlockSpec((d, d), lambda i: (0, 0)),         # w1a
                pl.BlockSpec((d, d), lambda i: (0, 0)),         # w1b
                pl.BlockSpec((1, d), lambda i: (0, 0)),         # b1
                pl.BlockSpec((d, d), lambda i: (0, 0)),         # w2
                pl.BlockSpec((1, d), lambda i: (0, 0)),         # b2
            ],
            out_specs=pl.BlockSpec((bt, P, d), lambda i: (i, 0, 0)),
        ),
        compiler_params=pltpu.CompilerParams(
            dimension_semantics=("parallel",),
        ),
    )(xc, si, sj, w1a, w1b, b1, w2, b2)


def person_to_person_interaction(x, params, N, *, compute_dtype=jnp.bfloat16):
    """x: (B, N, d) person features. Returns (B, N*(N-1), d) in x.dtype."""
    B, N_, d = x.shape
    assert N_ == N
    P = N * (N - 1)

    # Ordered pairs (i, j), i != j, i-major order (== interaction_indexes).
    idx_i = jnp.asarray([i for i in range(N) for j in range(N) if i != j], jnp.int32)
    idx_j = jnp.asarray([j for i in range(N) for j in range(N) if i != j], jnp.int32)
    si = jax.nn.one_hot(idx_i, N, dtype=jnp.float32)     # (P, N), exact 0/1
    sj = jax.nn.one_hot(idx_j, N, dtype=jnp.float32)     # (P, N), exact 0/1

    # Split w1 into the halves applied to x_i and x_j.
    w1 = params["w1"]
    w1a = w1[:d].astype(compute_dtype)
    w1b = w1[d:].astype(compute_dtype)
    w2 = params["w2"].astype(compute_dtype)
    b1 = params["b1"].astype(jnp.float32)
    b2 = params["b2"].astype(jnp.float32)
    xc = x.astype(compute_dtype)

    bt = _choose_bt(B, P)
    return _interaction_forward(xc, si, sj, w1a, w1b, b1, w2, b2,
                                bt=bt, out_dtype=x.dtype)


def init_params(key, d):
    # build_mlp(input_dim=2d, hidden_dims=[d], output_dim=d):
    #   Linear(2d, d) -> ReLU -> Linear(d, d)
    k1, k2, k3, k4 = jax.random.split(key, 4)
    s1 = (6.0 / (2 * d + d)) ** 0.5
    s2 = (6.0 / (d + d)) ** 0.5
    return {
        "w1": jax.random.uniform(k1, (2 * d, d), jnp.float32, -s1, s1),
        "b1": jax.random.uniform(k2, (1, d), jnp.float32, -0.01, 0.01),
        "w2": jax.random.uniform(k3, (d, d), jnp.float32, -s2, s2),
        "b2": jax.random.uniform(k4, (1, d), jnp.float32, -0.01, 0.01),
    }


def _reference(x, params, N):
    """Pure-JAX f32 reference mirroring the PyTorch forward exactly."""
    B, _, d = x.shape
    rep = jnp.tile(x, (1, N, 1))                               # repeat(1, N, 1)
    tem1 = rep.reshape(B, N, N, d).transpose(0, 2, 1, 3).reshape(B, N * N, d)
    tem2 = rep
    tem3 = jnp.concatenate([tem1, tem2], axis=-1)
    idx = jnp.asarray(
        [N * i + j for i in range(N) for j in range(N) if N * i + j != N * i + i],
        jnp.int32,
    )
    inter = tem3[:, idx, :]                                    # (B, P, 2d)
    h = jnp.maximum(inter @ params["w1"] + params["b1"], 0.0)
    return h @ params["w2"] + params["b2"]


if __name__ == "__main__":
    key = jax.random.PRNGKey(0)
    B, N, J, d_model = 2, 4, 17, 32   # J unused by forward (kept for parity)

    kx, kp = jax.random.split(key)
    x = jax.random.normal(kx, (B, N, d_model), jnp.float32)
    params = init_params(kp, d_model)

    ref = _reference(x, params, N)

    # 1) f32 compute path: strict semantic check against the reference.
    fwd_f32 = jax.jit(functools.partial(
        person_to_person_interaction, N=N, compute_dtype=jnp.float32))
    out_f32 = jax.block_until_ready(fwd_f32(x, params))
    assert out_f32.shape == (B, N * (N - 1), d_model), out_f32.shape
    assert jnp.allclose(out_f32, ref, atol=1e-4, rtol=1e-4), \
        float(jnp.max(jnp.abs(out_f32 - ref)))

    # 2) default bf16 compute path (mem-bound win): looser tolerance vs f32 ref.
    fwd_bf16 = jax.jit(functools.partial(
        person_to_person_interaction, N=N, compute_dtype=jnp.bfloat16))
    out_bf16 = jax.block_until_ready(fwd_bf16(x, params))
    assert out_bf16.shape == (B, N * (N - 1), d_model), out_bf16.shape
    assert jnp.allclose(out_bf16, ref, atol=5e-2, rtol=5e-2), \
        float(jnp.max(jnp.abs(out_bf16 - ref)))

    print("KERNEL_OK")
</pallas_src>

<mosaic_0001>
module attributes {stable_mosaic.version = 11 : i64} {
  func.func @_pair_mlp_kernel(%arg0: i32, %arg1: memref<1x4x32xf32, #tpu.memory_space<vmem>>, %arg2: memref<12x4xf32, #tpu.memory_space<vmem>>, %arg3: memref<12x4xf32, #tpu.memory_space<vmem>>, %arg4: memref<32x32xf32, #tpu.memory_space<vmem>>, %arg5: memref<32x32xf32, #tpu.memory_space<vmem>>, %arg6: memref<1x32xf32, #tpu.memory_space<vmem>>, %arg7: memref<32x32xf32, #tpu.memory_space<vmem>>, %arg8: memref<1x32xf32, #tpu.memory_space<vmem>>, %arg9: memref<1x12x32xf32, #tpu.memory_space<vmem>>) attributes {dimension_semantics = [#tpu.dimension_semantics<parallel>], iteration_bounds = array<i64: 2>, scalar_prefetch = 0 : i64, scratch_operands = 0 : i64, tpu.core_type = #tpu.core_type<tc>, window_params = [{transform_indices = @transform_0, window_bounds = array<i64: 1, 4, 32>}, {pipeline_mode = #tpu.pipeline_mode<synchronous>, transform_indices = @transform_1, window_bounds = array<i64: 12, 4>}, {pipeline_mode = #tpu.pipeline_mode<synchronous>, transform_indices = @transform_2, window_bounds = array<i64: 12, 4>}, {pipeline_mode = #tpu.pipeline_mode<synchronous>, transform_indices = @transform_3, window_bounds = array<i64: 32, 32>}, {pipeline_mode = #tpu.pipeline_mode<synchronous>, transform_indices = @transform_4, window_bounds = array<i64: 32, 32>}, {pipeline_mode = #tpu.pipeline_mode<synchronous>, transform_indices = @transform_5, window_bounds = array<i64: 1, 32>}, {pipeline_mode = #tpu.pipeline_mode<synchronous>, transform_indices = @transform_6, window_bounds = array<i64: 32, 32>}, {pipeline_mode = #tpu.pipeline_mode<synchronous>, transform_indices = @transform_7, window_bounds = array<i64: 1, 32>}, {transform_indices = @transform_8, window_bounds = array<i64: 1, 12, 32>}]} {
    %c0 = arith.constant 0 : index
    %c0_0 = arith.constant 0 : index
    %0 = vector.load %arg2[%c0, %c0_0] : memref<12x4xf32, #tpu.memory_space<vmem>>, vector<12x4xf32>
    %c0_1 = arith.constant 0 : index
    %c0_2 = arith.constant 0 : index
    %1 = vector.load %arg3[%c0_1, %c0_2] : memref<12x4xf32, #tpu.memory_space<vmem>>, vector<12x4xf32>
    %c0_3 = arith.constant 0 : index
    %c0_4 = arith.constant 0 : index
    %2 = vector.load %arg4[%c0_3, %c0_4] : memref<32x32xf32, #tpu.memory_space<vmem>>, vector<32x32xf32>
    %c0_5 = arith.constant 0 : index
    %c0_6 = arith.constant 0 : index
    %3 = vector.load %arg5[%c0_5, %c0_6] : memref<32x32xf32, #tpu.memory_space<vmem>>, vector<32x32xf32>
    %c0_7 = arith.constant 0 : index
    %c0_8 = arith.constant 0 : index
    %4 = vector.load %arg7[%c0_7, %c0_8] : memref<32x32xf32, #tpu.memory_space<vmem>>, vector<32x32xf32>
    %c0_9 = arith.constant 0 : index
    %c0_10 = arith.constant 0 : index
    %5 = vector.load %arg6[%c0_9, %c0_10] : memref<1x32xf32, #tpu.memory_space<vmem>>, vector<1x32xf32>
    %c0_11 = arith.constant 0 : index
    %c0_12 = arith.constant 0 : index
    %6 = vector.load %arg8[%c0_11, %c0_12] : memref<1x32xf32, #tpu.memory_space<vmem>>, vector<1x32xf32>
    %c0_13 = arith.constant 0 : index
    %c0_14 = arith.constant 0 : index
    %c0_15 = arith.constant 0 : index
    %7 = vector.load %arg1[%c0_13, %c0_14, %c0_15] : memref<1x4x32xf32, #tpu.memory_space<vmem>>, vector<1x4x32xf32>
    %8 = vector.shape_cast %7 : vector<1x4x32xf32> to vector<4x32xf32>
    %cst = arith.constant dense<0.000000e+00> : vector<4x32xf32>
    %9 = tpu.matmul %8, %2, %cst {dimension_numbers = #tpu.dot_dimension_numbers<[1], [0], [0], [1], [0, 0, 1, 1], [], []>} : vector<4x32xf32>, vector<32x32xf32>, vector<4x32xf32> -> vector<4x32xf32>
    %cst_16 = arith.constant dense<0.000000e+00> : vector<4x32xf32>
    %10 = tpu.matmul %8, %3, %cst_16 {dimension_numbers = #tpu.dot_dimension_numbers<[1], [0], [0], [1], [0, 0, 1, 1], [], []>} : vector<4x32xf32>, vector<32x32xf32>, vector<4x32xf32> -> vector<4x32xf32>
    %cst_17 = arith.constant dense<0.000000e+00> : vector<12x32xf32>
    %11 = tpu.matmul %0, %9, %cst_17 {dimension_numbers = #tpu.dot_dimension_numbers<[1], [0], [0], [1], [0, 0, 1, 1], [], []>} : vector<12x4xf32>, vector<4x32xf32>, vector<12x32xf32> -> vector<12x32xf32>
    %cst_18 = arith.constant dense<0.000000e+00> : vector<12x32xf32>
    %12 = tpu.matmul %1, %10, %cst_18 {dimension_numbers = #tpu.dot_dimension_numbers<[1], [0], [0], [1], [0, 0, 1, 1], [], []>} : vector<12x4xf32>, vector<4x32xf32>, vector<12x32xf32> -> vector<12x32xf32>
    %13 = arith.addf %11, %12 : vector<12x32xf32>
    %14 = vector.broadcast %5 : vector<1x32xf32> to vector<12x32xf32>
    %15 = arith.addf %13, %14 : vector<12x32xf32>
    %cst_19 = arith.constant 0.000000e+00 : f32
    %16 = vector.broadcast %cst_19 : f32 to vector<12x32xf32>
    %17 = arith.maximumf %15, %16 : vector<12x32xf32>
    %cst_20 = arith.constant dense<0.000000e+00> : vector<12x32xf32>
    %18 = tpu.matmul %17, %4, %cst_20 {dimension_numbers = #tpu.dot_dimension_numbers<[1], [0], [0], [1], [0, 0, 1, 1], [], []>} : vector<12x32xf32>, vector<32x32xf32>, vector<12x32xf32> -> vector<12x32xf32>
    %19 = vector.broadcast %6 : vector<1x32xf32> to vector<12x32xf32>
    %20 = arith.addf %18, %19 : vector<12x32xf32>
    %c0_21 = arith.constant 0 : index
    %c0_22 = arith.constant 0 : index
    %c0_23 = arith.constant 0 : index
    %21 = vector.load %arg9[%c0_21, %c0_22, %c0_23] : memref<1x12x32xf32, #tpu.memory_space<vmem>>, vector<1x12x32xf32>
    %22 = vector.shape_cast %21 : vector<1x12x32xf32> to vector<12x32xf32>
    %23 = vector.shape_cast %20 : vector<12x32xf32> to vector<1x12x32xf32>
    tpu.vector_store %arg9[%c0_21, %c0_22, %c0_23], %23 {strides = array<i32>} : memref<1x12x32xf32, #tpu.memory_space<vmem>>, vector<1x12x32xf32>,
    return
  }
  func.func @transform_0(%arg0: i32) -> (i32, i32, i32) {
    %c0_i32 = arith.constant 0 : i32
    %c0_i32_0 = arith.constant 0 : i32
    %c0_i32_1 = arith.constant 0 : i32
    return %arg0, %c0_i32, %c0_i32_0 : i32, i32, i32
  }
  func.func @transform_1(%arg0: i32) -> (i32, i32) {
    %c0_i32 = arith.constant 0 : i32
    %c0_i32_0 = arith.constant 0 : i32
    %c0_i32_1 = arith.constant 0 : i32
    return %c0_i32, %c0_i32_0 : i32, i32
  }
  func.func @transform_2(%arg0: i32) -> (i32, i32) {
    %c0_i32 = arith.constant 0 : i32
    %c0_i32_0 = arith.constant 0 : i32
    %c0_i32_1 = arith.constant 0 : i32
    return %c0_i32, %c0_i32_0 : i32, i32
  }
  func.func @transform_3(%arg0: i32) -> (i32, i32) {
    %c0_i32 = arith.constant 0 : i32
    %c0_i32_0 = arith.constant 0 : i32
    %c0_i32_1 = arith.constant 0 : i32
    return %c0_i32, %c0_i32_0 : i32, i32
  }
  func.func @transform_4(%arg0: i32) -> (i32, i32) {
    %c0_i32 = arith.constant 0 : i32
    %c0_i32_0 = arith.constant 0 : i32
    %c0_i32_1 = arith.constant 0 : i32
    return %c0_i32, %c0_i32_0 : i32, i32
  }
  func.func @transform_5(%arg0: i32) -> (i32, i32) {
    %c0_i32 = arith.constant 0 : i32
    %c0_i32_0 = arith.constant 0 : i32
    %c0_i32_1 = arith.constant 0 : i32
    return %c0_i32, %c0_i32_0 : i32, i32
  }
  func.func @transform_6(%arg0: i32) -> (i32, i32) {
    %c0_i32 = arith.constant 0 : i32
    %c0_i32_0 = arith.constant 0 : i32
    %c0_i32_1 = arith.constant 0 : i32
    return %c0_i32, %c0_i32_0 : i32, i32
  }
  func.func @transform_7(%arg0: i32) -> (i32, i32) {
    %c0_i32 = arith.constant 0 : i32
    %c0_i32_0 = arith.constant 0 : i32
    %c0_i32_1 = arith.constant 0 : i32
    return %c0_i32, %c0_i32_0 : i32, i32
  }
  func.func @transform_8(%arg0: i32) -> (i32, i32, i32) {
    %c0_i32 = arith.constant 0 : i32
    %c0_i32_0 = arith.constant 0 : i32
    %c0_i32_1 = arith.constant 0 : i32
    return %arg0, %c0_i32, %c0_i32_0 : i32, i32, i32
  }
}

</mosaic_0001>

<llo_original>
// kernel: person_to_person_interaction.1
$region0: #{person_to_person_interaction.1}
  #allocation0 [shape = 'u32[]', space=smem, size = 0x4, offset = 0x4, fixed_abs, tag = 'smem constant byte address 0x4 - core index']
  #allocation1 [shape = 'u32[72,128]{1,0:T(1,128)}', space=vmem, size = 0x9000, scoped, tag = 'internal scratch']
  %s0 = inlined_call_operand.vmem [shape: f32[2,4,32], index: 0, kind: input, shape index: {}]
  %s1 = inlined_call_operand.vmem [shape: f32[12,4], index: 1, kind: input, shape index: {}]
  %s2 = inlined_call_operand.vmem [shape: f32[12,4], index: 2, kind: input, shape index: {}]
  %s3 = inlined_call_operand.vmem [shape: f32[32,32], index: 3, kind: input, shape index: {}]
  %s4 = inlined_call_operand.vmem [shape: f32[32,32], index: 4, kind: input, shape index: {}]
  %s5 = inlined_call_operand.vmem [shape: f32[1,32], index: 5, kind: input, shape index: {}]
  %s6 = inlined_call_operand.vmem [shape: f32[32,32], index: 6, kind: input, shape index: {}]
  %s7 = inlined_call_operand.vmem [shape: f32[1,32], index: 7, kind: input, shape index: {}]
  %s8 = inlined_call_operand.vmem [shape: f32[2,12,32], index: 8, kind: output, shape index: {}]
  %s9 = sld [smem:[#allocation0]]
  $region65: #{person_to_person_interaction.1} parent=0
    _
  %s11 = ssub.s32 1, %s9
  %s12 = scalar_select 0, %s11, %s9
  loop: start=0, step=1, limit=4
  $region2: #{person_to_person_interaction.1} parent=0 // loop_pre_header
    _
  $region3: #{person_to_person_interaction.1} parent=0 // loop_header
    %s14 = sphi 0, %s18
    %p15 = scmp.ge.s32.totalorder %s14, 4
    %s24 = sphi 0, %s26
    %s27 = sphi 0, %s24
    %s28 = sphi 0, %s27
    %s44 = sphi 0, %s28
    %s48 = sphi 0, %s48
    %s50 = sphi 0, %s48
    %s51 = sphi 0, %s50
    %s65 = sphi 0, %s51
    %s69 = sphi 0, %s69
    %s71 = sphi 0, %s69
    %s72 = sphi 0, %s71
    %s86 = sphi 0, %s72
    %s90 = sphi 0, %s90
    %s92 = sphi 0, %s90
    %s93 = sphi 0, %s92
    %s107 = sphi 0, %s93
    %s111 = sphi 0, %s111
    %s113 = sphi 0, %s111
    %s114 = sphi 0, %s113
    %s128 = sphi 0, %s114
    %s132 = sphi 0, %s132
    %s134 = sphi 0, %s132
    %s135 = sphi 0, %s134
    %s149 = sphi 0, %s135
    %s153 = sphi 0, %s153
    %s155 = sphi 0, %s153
    %s156 = sphi 0, %s155
    %s170 = sphi 0, %s156
    %s174 = sphi 0, %s174
    %s176 = sphi 0, %s174
    %s177 = sphi 0, %s176
    %s191 = sphi 0, %s177
    %s197 = sphi 0, %s199
    %s200 = sphi 0, %s197
    %s201 = sphi 0, %s200
    %s217 = sphi 0, %s201
  $region4: #{person_to_person_interaction.1} parent=0 // loop_header_branch
    %17 = sbr.rel (%p15) target = $region8
  $region5: #{person_to_person_interaction.1} parent=0 // loop_body
    %s19 = ssub.s32 %s14, 1
    %s20 = ssub.s32 %s14, 2
    %s21 = sadd.s32 %s14, 1
    %s22 = ssub.s32 %s14, %s21
    %p23 = scmp.eq.s32.totalorder %s22, 0
    %s25 = sadd.s32 %s24, 1
    %s26 = scalar_select %p23, %s24, %s25
    %p29 = pneg %p23
    %p30 = scmp.eq.s32.totalorder %s14, 1
    %p31 = por %p29, %p30
    %p32 = scmp.ne.s32.totalorder %s24, %s27
    %p33 = scmp.eq.s32.totalorder %s14, 0
    %p34 = por %p32, %p33
    %p35 = scmp.ne.s32.totalorder %s24, %s27
    %p36 = scmp.eq.s32.totalorder %s19, 1
    %p37 = por %p35, %p36
    %p38 = scmp.ne.s32.totalorder %s27, %s28
    %p39 = scmp.eq.s32.totalorder %s19, 0
    %p40 = por %p38, %p39
    %p41 = scmp.ne.s32.totalorder %s27, %s28
    %p42 = scmp.eq.s32.totalorder %s20, 1
    %p43 = por %p41, %p42
    %p45 = scmp.ne.s32.totalorder %s28, %s44
    %p46 = scmp.eq.s32.totalorder %s20, 0
    %p47 = por %p45, %p46
    %s49 = sadd.s32 %s48, 1
    %p52 = scmp.eq.s32.totalorder %s14, 1
    %p53 = scmp.ne.s32.totalorder %s48, %s50
    %p54 = scmp.eq.s32.totalorder %s14, 0
    %p55 = por %p53, %p54
    %p56 = scmp.ne.s32.totalorder %s48, %s50
    %p57 = scmp.eq.s32.totalorder %s19, 1
    %p58 = por %p56, %p57
    %p59 = scmp.ne.s32.totalorder %s50, %s51
    %p60 = scmp.eq.s32.totalorder %s19, 0
    %p61 = por %p59, %p60
    %p62 = scmp.ne.s32.totalorder %s50, %s51
    %p63 = scmp.eq.s32.totalorder %s20, 1
    %p64 = por %p62, %p63
    %p66 = scmp.ne.s32.totalorder %s51, %s65
    %p67 = scmp.eq.s32.totalorder %s20, 0
    %p68 = por %p66, %p67
    %s70 = sadd.s32 %s69, 1
    %p73 = scmp.eq.s32.totalorder %s14, 1
    %p74 = scmp.ne.s32.totalorder %s69, %s71
    %p75 = scmp.eq.s32.totalorder %s14, 0
    %p76 = por %p74, %p75
    %p77 = scmp.ne.s32.totalorder %s69, %s71
    %p78 = scmp.eq.s32.totalorder %s19, 1
    %p79 = por %p77, %p78
    %p80 = scmp.ne.s32.totalorder %s71, %s72
    %p81 = scmp.eq.s32.totalorder %s19, 0
    %p82 = por %p80, %p81
    %p83 = scmp.ne.s32.totalorder %s71, %s72
    %p84 = scmp.eq.s32.totalorder %s20, 1
    %p85 = por %p83, %p84
    %p87 = scmp.ne.s32.totalorder %s72, %s86
    %p88 = scmp.eq.s32.totalorder %s20, 0
    %p89 = por %p87, %p88
    %s91 = sadd.s32 %s90, 1
    %p94 = scmp.eq.s32.totalorder %s14, 1
    %p95 = scmp.ne.s32.totalorder %s90, %s92
    %p96 = scmp.eq.s32.totalorder %s14, 0
    %p97 = por %p95, %p96
    %p98 = scmp.ne.s32.totalorder %s90, %s92
    %p99 = scmp.eq.s32.totalorder %s19, 1
    %p100 = por %p98, %p99
    %p101 = scmp.ne.s32.totalorder %s92, %s93
    %p102 = scmp.eq.s32.totalorder %s19, 0
    %p103 = por %p101, %p102
    %p104 = scmp.ne.s32.totalorder %s92, %s93
    %p105 = scmp.eq.s32.totalorder %s20, 1
    %p106 = por %p104, %p105
    %p108 = scmp.ne.s32.totalorder %s93, %s107
    %p109 = scmp.eq.s32.totalorder %s20, 0
    %p110 = por %p108, %p109
    %s112 = sadd.s32 %s111, 1
    %p115 = scmp.eq.s32.totalorder %s14, 1
    %p116 = scmp.ne.s32.totalorder %s111, %s113
    %p117 = scmp.eq.s32.totalorder %s14, 0
    %p118 = por %p116, %p117
    %p119 = scmp.ne.s32.totalorder %s111, %s113
    %p120 = scmp.eq.s32.totalorder %s19, 1
    %p121 = por %p119, %p120
    %p122 = scmp.ne.s32.totalorder %s113, %s114
    %p123 = scmp.eq.s32.totalorder %s19, 0
    %p124 = por %p122, %p123
    %p125 = scmp.ne.s32.totalorder %s113, %s114
    %p126 = scmp.eq.s32.totalorder %s20, 1
    %p127 = por %p125, %p126
    %p129 = scmp.ne.s32.totalorder %s114, %s128
    %p130 = scmp.eq.s32.totalorder %s20, 0
    %p131 = por %p129, %p130
    %s133 = sadd.s32 %s132, 1
    %p136 = scmp.eq.s32.totalorder %s14, 1
    %p137 = scmp.ne.s32.totalorder %s132, %s134
    %p138 = scmp.eq.s32.totalorder %s14, 0
    %p139 = por %p137, %p138
    %p140 = scmp.ne.s32.totalorder %s132, %s134
    %p141 = scmp.eq.s32.totalorder %s19, 1
    %p142 = por %p140, %p141
    %p143 = scmp.ne.s32.totalorder %s134, %s135
    %p144 = scmp.eq.s32.totalorder %s19, 0
    %p145 = por %p143, %p144
    %p146 = scmp.ne.s32.totalorder %s134, %s135
    %p147 = scmp.eq.s32.totalorder %s20, 1
    %p148 = por %p146, %p147
    %p150 = scmp.ne.s32.totalorder %s135, %s149
    %p151 = scmp.eq.s32.totalorder %s20, 0
    %p152 = por %p150, %p151
    %s154 = sadd.s32 %s153, 1
    %p157 = scmp.eq.s32.totalorder %s14, 1
    %p158 = scmp.ne.s32.totalorder %s153, %s155
    %p159 = scmp.eq.s32.totalorder %s14, 0
    %p160 = por %p158, %p159
    %p161 = scmp.ne.s32.totalorder %s153, %s155
    %p162 = scmp.eq.s32.totalorder %s19, 1
    %p163 = por %p161, %p162
    %p164 = scmp.ne.s32.totalorder %s155, %s156
    %p165 = scmp.eq.s32.totalorder %s19, 0
    %p166 = por %p164, %p165
    %p167 = scmp.ne.s32.totalorder %s155, %s156
    %p168 = scmp.eq.s32.totalorder %s20, 1
    %p169 = por %p167, %p168
    %p171 = scmp.ne.s32.totalorder %s156, %s170
    %p172 = scmp.eq.s32.totalorder %s20, 0
    %p173 = por %p171, %p172
    %s175 = sadd.s32 %s174, 1
    %p178 = scmp.eq.s32.totalorder %s14, 1
    %p179 = scmp.ne.s32.totalorder %s174, %s176
    %p180 = scmp.eq.s32.totalorder %s14, 0
    %p181 = por %p179, %p180
    %p182 = scmp.ne.s32.totalorder %s174, %s176
    %p183 = scmp.eq.s32.totalorder %s19, 1
    %p184 = por %p182, %p183
    %p185 = scmp.ne.s32.totalorder %s176, %s177
    %p186 = scmp.eq.s32.totalorder %s19, 0
    %p187 = por %p185, %p186
    %p188 = scmp.ne.s32.totalorder %s176, %s177
    %p189 = scmp.eq.s32.totalorder %s20, 1
    %p190 = por %p188, %p189
    %p192 = scmp.ne.s32.totalorder %s177, %s191
    %p193 = scmp.eq.s32.totalorder %s20, 0
    %p194 = por %p192, %p193
    %s195 = ssub.s32 %s14, %s21
    %p196 = scmp.eq.s32.totalorder %s195, 0
    %s198 = sadd.s32 %s197, 1
    %s199 = scalar_select %p196, %s197, %s198
    %p202 = pneg %p196
    %p203 = scmp.eq.s32.totalorder %s14, 1
    %p204 = por %p202, %p203
    %p205 = scmp.ne.s32.totalorder %s197, %s200
    %p206 = scmp.eq.s32.totalorder %s14, 0
    %p207 = por %p205, %p206
    %p208 = scmp.ne.s32.totalorder %s197, %s200
    %p209 = scmp.eq.s32.totalorder %s19, 1
    %p210 = por %p208, %p209
    %p211 = scmp.ne.s32.totalorder %s200, %s201
    %p212 = scmp.eq.s32.totalorder %s19, 0
    %p213 = por %p211, %p212
    %p214 = scmp.ne.s32.totalorder %s200, %s201
    %p215 = scmp.eq.s32.totalorder %s20, 1
    %p216 = por %p214, %p215
    %p218 = scmp.ne.s32.totalorder %s201, %s217
    %p219 = scmp.eq.s32.totalorder %s20, 0
    %p220 = por %p218, %p219
    %p221 = scmp.le.s32.totalorder 1, %s14
    %p222 = scmp.lt.s32.totalorder %s14, 3
    %p223 = pnand %p221, %p222
    %p224 = pneg %p223
    // Predicated region
    $region9: #{person_to_person_interaction.1} parent=5 // pred_check
      _
    $region10: #{person_to_person_interaction.1} parent=5 // pred_check_branch
      %226 = sbr.rel (%p223) target = $region12
    $region11: #{person_to_person_interaction.1} parent=5 // pred_region
      %s227 = ssub.s32 %s14, 1
      // Predicated region
      $region13: #{person_to_person_interaction.1} parent=11 // pred_check
        %p228 = pneg %p61
      $region14: #{person_to_person_interaction.1} parent=11 // pred_check_branch
        %230 = sbr.rel (%p228) target = $region16
      $region15: #{person_to_person_interaction.1} parent=11 // pred_region
        _
      $region16: #{person_to_person_interaction.1} parent=11 // pred_fallthru
        _
      // Predicated region
      $region17: #{person_to_person_interaction.1} parent=11 // pred_check
        %p231 = pneg %p82
      $region18: #{person_to_person_interaction.1} parent=11 // pred_check_branch
        %233 = sbr.rel (%p231) target = $region20
      $region19: #{person_to_person_interaction.1} parent=11 // pred_region
        _
      $region20: #{person_to_person_interaction.1} parent=11 // pred_fallthru
        _
      // Predicated region
      $region21: #{person_to_person_interaction.1} parent=11 // pred_check
        %p234 = pneg %p103
      $region22: #{person_to_person_interaction.1} parent=11 // pred_check_branch
        %236 = sbr.rel (%p234) target = $region24
      $region23: #{person_to_person_interaction.1} parent=11 // pred_region
        _
      $region24: #{person_to_person_interaction.1} parent=11 // pred_fallthru
        _
      // Predicated region
      $region25: #{person_to_person_interaction.1} parent=11 // pred_check
        %p237 = pneg %p124
      $region26: #{person_to_person_interaction.1} parent=11 // pred_check_branch
        %239 = sbr.rel (%p237) target = $region28
      $region27: #{person_to_person_interaction.1} parent=11 // pred_region
        _
      $region28: #{person_to_person_interaction.1} parent=11 // pred_fallthru
        _
      // Predicated region
      $region29: #{person_to_person_interaction.1} parent=11 // pred_check
        %p240 = pneg %p145
      $region30: #{person_to_person_interaction.1} parent=11 // pred_check_branch
        %242 = sbr.rel (%p240) target = $region32
      $region31: #{person_to_person_interaction.1} parent=11 // pred_region
        _
      $region32: #{person_to_person_interaction.1} parent=11 // pred_fallthru
        _
      // Predicated region
      $region33: #{person_to_person_interaction.1} parent=11 // pred_check
        %p243 = pneg %p166
      $region34: #{person_to_person_interaction.1} parent=11 // pred_check_branch
        %245 = sbr.rel (%p243) target = $region36
      $region35: #{person_to_person_interaction.1} parent=11 // pred_region
        _
      $region36: #{person_to_person_interaction.1} parent=11 // pred_fallthru
        _
      // Predicated region
      $region37: #{person_to_person_interaction.1} parent=11 // pred_check
        %p246 = pneg %p187
      $region38: #{person_to_person_interaction.1} parent=11 // pred_check_branch
        %248 = sbr.rel (%p246) target = $region40
      $region39: #{person_to_person_interaction.1} parent=11 // pred_region
        _
      $region40: #{person_to_person_interaction.1} parent=11 // pred_fallthru
        _
    $region12: #{person_to_person_interaction.1} parent=5 // pred_fallthru
      _
    %p249 = scmp.lt.s32.totalorder %s14, 2
    // Predicated region
    $region41: #{person_to_person_interaction.1} parent=5 // pred_check
      %p250 = pneg %p249
    $region42: #{person_to_person_interaction.1} parent=5 // pred_check_branch
      %252 = sbr.rel (%p250) target = $region44
    $region43: #{person_to_person_interaction.1} parent=5 // pred_region
      // Predicated region
      $region45: #{person_to_person_interaction.1} parent=43 // pred_check
        %p253 = pneg %p34
      $region46: #{person_to_person_interaction.1} parent=43 // pred_check_branch
        %255 = sbr.rel (%p253) target = $region48
      $region47: #{person_to_person_interaction.1} parent=43 // pred_region
        %p256 = scmp.lt.s32.totalorder %s14, 1
        %s257 = scalar_select %p256, %s14, 1
        %s258 = smul.addr %s257, 4
        %s259 = scalar_lea.vmem %s0, %s258
      $region48: #{person_to_person_interaction.1} parent=43 // pred_fallthru
        _
    $region44: #{person_to_person_interaction.1} parent=5 // pred_fallthru
      _
    %p260 = scmp.le.s32.totalorder 1, %s14
    %p261 = scmp.lt.s32.totalorder %s14, 3
    %p262 = pnand %p260, %p261
    %p263 = pneg %p262
    // Predicated region
    $region49: #{person_to_person_interaction.1} parent=5 // pred_check
      _
    $region50: #{person_to_person_interaction.1} parent=5 // pred_check_branch
      %265 = sbr.rel (%p262) target = $region52
    $region51: #{person_to_person_interaction.1} parent=5 // pred_region
      %s266 = ssub.s32 %s14, 1
      %p267 = scmp.lt.s32.totalorder %s19, 1
      %s268 = scalar_select %p267, %s19, 1
      %s269 = smul.addr %s268, 4
      %s270 = scalar_lea.vmem %s0, %s269
      %p271 = pneg %p40
      %p272 = pneg %p37
      %p273 = pneg %p61
      %p274 = pneg %p58
      %p275 = pneg %p82
      %p276 = pneg %p79
      %p277 = pneg %p103
      %p278 = pneg %p100
      %p279 = pneg %p124
      %p280 = pneg %p121
      %p281 = pneg %p145
      %p282 = pneg %p142
      %p283 = pneg %p166
      %p284 = pneg %p163
      %p285 = pneg %p187
      %p286 = pneg %p184
      %p287 = pneg %p213
      %p288 = pneg %p210
      %p289 = scmp.lt.s32.totalorder %s19, 1
      %s290 = scalar_select %p289, %s19, 1
      %s291 = smul.addr %s290, 2
      %s292 = smul.addr %s291, 8
      %s293 = scalar_lea.vmem %s8, %s292
      %p294 = scmp.lt.s32.totalorder %s19, 1
      %s295 = scalar_select %p294, %s19, 1
      %s296 = smul.addr %s295, 4
      %s297 = scalar_lea.vmem %s0, %s296
      %p298 = scmp.lt.s32.totalorder %s19, 1
      %s299 = scalar_select %p298, %s19, 1
      %s300 = smul.addr %s299, 2
      %s301 = smul.addr %s300, 8
      %s302 = scalar_lea.vmem %s8, %s301
      %v303 = vld [vmem:[%s1] sm:$0xff]
      %v304 = vld [vmem:[%s1 + $0x8] sm:$0xf]
      %v305 = vld [vmem:[%s2] sm:$0xff]
      %v306 = vld [vmem:[%s2 + $0x8] sm:$0xf]
      %v307 = vld [vmem:[%s3] sm:$0xff]
      %v308 = vld [vmem:[%s3 + $0x8] sm:$0xff]
      %v309 = vld [vmem:[%s3 + $0x10] sm:$0xff]
      %v310 = vld [vmem:[%s3 + $0x18] sm:$0xff]
      %v311 = vld [vmem:[%s4] sm:$0xff]
      %v312 = vld [vmem:[%s4 + $0x8] sm:$0xff]
      %v313 = vld [vmem:[%s4 + $0x10] sm:$0xff]
      %v314 = vld [vmem:[%s4 + $0x18] sm:$0xff]
      %v315 = vld [vmem:[%s6] sm:$0xff]
      %v316 = vld [vmem:[%s6 + $0x8] sm:$0xff]
      %v317 = vld [vmem:[%s6 + $0x10] sm:$0xff]
      %v318 = vld [vmem:[%s6 + $0x18] sm:$0xff]
      %v319 = vld [vmem:[%s5] sm:$0x1]
      %v320 = vld [vmem:[%s7] sm:$0x1]
      %v321 = vld [vmem:[%s297] sm:$0xf]
      %vm322 = vcmask 261120
      %v324 = vsel %vm322, %v321, 0
      %326 = vmatpush.msra.mxu0 0.0
      %327 = vmatpush.msra.mxu0 0.0
      %328 = vmatpush.msra.mxu0 0.0
      %329 = vmatpush.msra.mxu0 0.0
      %330 = vmatpush.msra.mxu0 0.0
      %331 = vmatpush.msra.mxu0 0.0
      %332 = vmatpush.msra.mxu0 0.0
      %333 = vmatpush.msra.mxu0 0.0
      %334 = vmatpush.msra.mxu0 0.0
      %335 = vmatpush.msra.mxu0 0.0
      %336 = vmatpush.msra.mxu0 0.0
      %337 = vmatpush.msra.mxu0 0.0
      %338 = vmatpush.msra.mxu0 %v310
      %339 = vmatpush.msra.mxu0 %v309
      %340 = vmatpush.msra.mxu0 %v308
      %341 = vmatpush.msra.mxu0 %v307
      %342 = vmatmul.f32.gmra.mxu0 %v324
      %v343 = vpop.f32.mrf.mxu0
      %v344 = vadd.f32 0.0, %v343
      %345 = vdwg.mxu0
      %346 = vmatpush.msra.mxu0 0.0
      %347 = vmatpush.msra.mxu0 0.0
      %348 = vmatpush.msra.mxu0 0.0
      %349 = vmatpush.msra.mxu0 0.0
      %350 = vmatpush.msra.mxu0 0.0
      %351 = vmatpush.msra.mxu0 0.0
      %352 = vmatpush.msra.mxu0 0.0
      %353 = vmatpush.msra.mxu0 0.0
      %354 = vmatpush.msra.mxu0 0.0
      %355 = vmatpush.msra.mxu0 0.0
      %356 = vmatpush.msra.mxu0 0.0
      %357 = vmatpush.msra.mxu0 0.0
      %358 = vmatpush.msra.mxu0 %v314
      %359 = vmatpush.msra.mxu0 %v313
      %360 = vmatpush.msra.mxu0 %v312
      %361 = vmatpush.msra.mxu0 %v311
      %362 = vmatmul.f32.gmra.mxu0 %v324
      %v363 = vpop.f32.mrf.mxu0
      %v364 = vadd.f32 0.0, %v363
      %365 = vdwg.mxu0
      %vm366 = vcmask 31744
      %v368 = vsel %vm366, %v305, 0
      %v371 = vsel %vm366, %v306, 0
      %vm373 = vcmask 1043456
      %v375 = vsel %vm373, %v364, 0
      %377 = vmatpush.msra.mxu0 0.0
      %378 = vmatpush.msra.mxu0 0.0
      %379 = vmatpush.msra.mxu0 0.0
      %380 = vmatpush.msra.mxu0 0.0
      %381 = vmatpush.msra.mxu0 0.0
      %382 = vmatpush.msra.mxu0 0.0
      %383 = vmatpush.msra.mxu0 0.0
      %384 = vmatpush.msra.mxu0 0.0
      %385 = vmatpush.msra.mxu0 0.0
      %386 = vmatpush.msra.mxu0 0.0
      %387 = vmatpush.msra.mxu0 0.0
      %388 = vmatpush.msra.mxu0 0.0
      %389 = vmatpush.msra.mxu0 0.0
      %390 = vmatpush.msra.mxu0 0.0
      %391 = vmatpush.msra.mxu0 0.0
      %392 = vmatpush.msra.mxu0 %v375
      %393 = vmatmul.f32.gmra.mxu0 %v368
      %v394 = vpop.f32.mrf.mxu0
      %v395 = vadd.f32 0.0, %v394
      %396 = vmatmul.f32.gmra.mxu0 %v371
      %v397 = vpop.f32.mrf.mxu0
      %v398 = vadd.f32 0.0, %v397
      %399 = vdwg.mxu0
      %v401 = vsel %vm366, %v303, 0
      %v404 = vsel %vm366, %v304, 0
      %v407 = vsel %vm373, %v344, 0
      %409 = vmatpush.msra.mxu0 0.0
      %410 = vmatpush.msra.mxu0 0.0
      %411 = vmatpush.msra.mxu0 0.0
      %412 = vmatpush.msra.mxu0 0.0
      %413 = vmatpush.msra.mxu0 0.0
      %414 = vmatpush.msra.mxu0 0.0
      %415 = vmatpush.msra.mxu0 0.0
      %416 = vmatpush.msra.mxu0 0.0
      %417 = vmatpush.msra.mxu0 0.0
      %418 = vmatpush.msra.mxu0 0.0
      %419 = vmatpush.msra.mxu0 0.0
      %420 = vmatpush.msra.mxu0 0.0
      %421 = vmatpush.msra.mxu0 0.0
      %422 = vmatpush.msra.mxu0 0.0
      %423 = vmatpush.msra.mxu0 0.0
      %424 = vmatpush.msra.mxu0 %v407
      %425 = vmatmul.f32.gmra.mxu0 %v401
      %v426 = vpop.f32.mrf.mxu0
      %v427 = vadd.f32 %v395, %v426
      %428 = vmatmul.f32.gmra.mxu0 %v404
      %v429 = vpop.f32.mrf.mxu0
      %v430 = vadd.f32 %v398, %v429
      %431 = vdwg.mxu0
      %v433 = vperm.slane %v319, 0
      %v435 = vadd.f32 %v427, %v433
      %v436 = vadd.f32 %v430, %v433
      %v437 = vmax.f32 %v435, 0.0
      %v438 = vmax.f32 %v436, 0.0
      %v440 = vperm.slane %v320, 0
      %v443 = vsel %vm322, %v437, 0
      %v446 = vsel %vm322, %v438, 0
      %448 = vmatpush.msra.mxu0 0.0
      %449 = vmatpush.msra.mxu0 0.0
      %450 = vmatpush.msra.mxu0 0.0
      %451 = vmatpush.msra.mxu0 0.0
      %452 = vmatpush.msra.mxu0 0.0
      %453 = vmatpush.msra.mxu0 0.0
      %454 = vmatpush.msra.mxu0 0.0
      %455 = vmatpush.msra.mxu0 0.0
      %456 = vmatpush.msra.mxu0 0.0
      %457 = vmatpush.msra.mxu0 0.0
      %458 = vmatpush.msra.mxu0 0.0
      %459 = vmatpush.msra.mxu0 0.0
      %460 = vmatpush.msra.mxu0 %v318
      %461 = vmatpush.msra.mxu0 %v317
      %462 = vmatpush.msra.mxu0 %v316
      %463 = vmatpush.msra.mxu0 %v315
      %464 = vmatmul.f32.gmra.mxu0 %v443
      %v465 = vpop.f32.mrf.mxu0
      %v466 = vadd.f32 %v440, %v465
      %467 = vmatmul.f32.gmra.mxu0 %v446
      %v468 = vpop.f32.mrf.mxu0
      %v469 = vadd.f32 %v440, %v468
      %470 = vdwg.mxu0
      %471 = vst.msk [vmem:[%s302] sm:$0xff] %vm322, %v466
      %vm472 = vcmask 257024
      %473 = vst.msk [vmem:[%s302 + $0x8] sm:$0xf] %vm472, %v469
      %p474 = scmp.lt.s32.totalorder %s19, 1
      %s475 = scalar_select %p474, %s19, 1
      %s476 = smul.addr %s475, 2
      %s477 = smul.addr %s476, 8
      %s478 = scalar_lea.vmem %s8, %s477
      // Predicated region
      $region53: #{person_to_person_interaction.1} parent=51 // pred_check
        %p479 = pneg %p210
      $region54: #{person_to_person_interaction.1} parent=51 // pred_check_branch
        %481 = sbr.rel (%p479) target = $region56
      $region55: #{person_to_person_interaction.1} parent=51 // pred_region
        _
      $region56: #{person_to_person_interaction.1} parent=51 // pred_fallthru
        _
    $region52: #{person_to_person_interaction.1} parent=5 // pred_fallthru
      _
    %p482 = scmp.le.s32.totalorder 2, %s14
    // Predicated region
    $region57: #{person_to_person_interaction.1} parent=5 // pred_check
      %p483 = pneg %p482
    $region58: #{person_to_person_interaction.1} parent=5 // pred_check_branch
      %485 = sbr.rel (%p483) target = $region60
    $region59: #{person_to_person_interaction.1} parent=5 // pred_region
      %s486 = ssub.s32 %s14, 2
      // Predicated region
      $region61: #{person_to_person_interaction.1} parent=59 // pred_check
        %p487 = pneg %p216
      $region62: #{person_to_person_interaction.1} parent=59 // pred_check_branch
        %489 = sbr.rel (%p487) target = $region64
      $region63: #{person_to_person_interaction.1} parent=59 // pred_region
        %p490 = scmp.lt.s32.totalorder %s20, 1
        %s491 = scalar_select %p490, %s20, 1
        %s492 = smul.addr %s491, 2
        %s493 = smul.addr %s492, 8
        %s494 = scalar_lea.vmem %s8, %s493
      $region64: #{person_to_person_interaction.1} parent=59 // pred_fallthru
        _
    $region60: #{person_to_person_interaction.1} parent=5 // pred_fallthru
      _
  $region6: #{person_to_person_interaction.1} parent=0 // loop_footer
    %s18 = sadd.s32 1, %s14
  $region7: #{person_to_person_interaction.1} parent=0 // loop_footer_branch
    %13 = sbr.rel target = $region3
  $region8: #{person_to_person_interaction.1} parent=0 // loop_exit
    _

</llo_original>
